<compile_context>
chip_gen: v7x
topology: tpu7x:2x2x1
jax: 0.10.0
libtpu: 0.0.40
codegen_flags: <defaults>
</compile_context>

<pallas_src>
import functools

import jax
import jax.numpy as jnp
from jax.experimental import pallas as pl
from jax.experimental.pallas import tpu as pltpu

_LANE = 128
_SUBLANE = 8


def _round_up(n, m):
    return ((n + m - 1) // m) * m


def _cdiv(a, b):
    return (a + b - 1) // b


def _num_tensorcores():
    """Best-effort TensorCore count per chip (v7x has 2; v5e/v6e have 1)."""
    try:
        kind = str(getattr(jax.devices()[0], "device_kind", "")).lower()
        if "v7" in kind:
            return 2
    except Exception:
        pass
    return 1


def _vmem_capacity_bytes():
    """Per-core VMEM capacity; conservative 64 MiB fallback (v7x)."""
    try:
        info = pltpu.get_tpu_info()
        cap = getattr(info, "vmem_capacity_bytes", None)
        if cap:
            return int(cap)
    except Exception:
        pass
    return 64 * 1024 * 1024


def _fused_mlp_kernel(x_ref, *refs, num_layers, compute_dtype, act_dtype):
    # refs = (w0, b0, w1, b1, ..., w_{L-1}, b_{L-1}, out_ref)
    out_ref = refs[-1]
    h = x_ref[...].astype(act_dtype)                  # (TILE_B, D0_pad)
    for i in range(num_layers):
        w = refs[2 * i][...]                          # (Din_pad, Dout_pad), pre-transposed
        b = refs[2 * i + 1][...]                      # (1, Dout_pad), f32
        y = jnp.dot(h.astype(compute_dtype), w,       # MXU, f32 accumulation
                    preferred_element_type=jnp.float32)
        h = (y + b).astype(act_dtype)                 # bias add (VPU)
        if i < num_layers - 1:
            h = jnp.tanh(h)                           # tanh (EUP)
    out_ref[...] = h.astype(out_ref.dtype)


def prepare_mlp_params(params, *, use_bf16=True):
    """One-time pre-transpose + zero-pad of nn.Linear-style params.

    params: list of (W, b) with W shaped (out, in) like nn.Linear.
    Hoisted out of mlp_forward so XLA does not re-execute the O(weight-bytes)
    transpose/pad on every forward call.
    """
    compute_dtype = jnp.bfloat16 if use_bf16 else jnp.float32
    dims = [params[0][0].shape[1]] + [w.shape[0] for (w, _) in params]
    dims_pad = [_round_up(d, _LANE) for d in dims]

    ops = []
    for i, (w, b) in enumerate(params):
        d_out, d_in = w.shape
        w_p = (jnp.zeros((dims_pad[i], dims_pad[i + 1]), compute_dtype)
               .at[:d_in, :d_out].set(w.T.astype(compute_dtype)))
        b_p = (jnp.zeros((1, dims_pad[i + 1]), jnp.float32)
               .at[0, :d_out].set(b.astype(jnp.float32)))
        ops += [w_p, b_p]

    return dict(ops=tuple(ops), dims=tuple(dims), dims_pad=tuple(dims_pad),
                compute_dtype=compute_dtype, use_bf16=use_bf16)


def mlp_forward(x, prepared, *, block_b=None, bf16_activations=False):
    """Fused forward pass using params pre-padded by prepare_mlp_params."""
    B, D_in = x.shape
    dims = prepared["dims"]
    dims_pad = prepared["dims_pad"]
    ops = prepared["ops"]
    compute_dtype = prepared["compute_dtype"]
    num_layers = len(dims) - 1
    assert D_in == dims[0], f"input dim {D_in} != model dim {dims[0]}"

    act_dtype = jnp.bfloat16 if bf16_activations else jnp.float32
    x_tile_dtype = compute_dtype if prepared["use_bf16"] else x.dtype
    out_dtype = x.dtype
    itemsize = lambda dt: jnp.dtype(dt).itemsize

    # ---- batch tiling: feed every TensorCore, minimize batch padding ----
    B_pad8 = _round_up(B, _SUBLANE)
    n_cores = _num_tensorcores()
    if block_b is None:
        n_steps = max(_cdiv(B_pad8, 512), min(n_cores, _cdiv(B_pad8, _SUBLANE)))
        block_b = _round_up(_cdiv(B_pad8, n_steps), _SUBLANE)
    else:
        block_b = _round_up(block_b, _SUBLANE)

    # ---- generation-aware VMEM budget ----
    vmem_cap = _vmem_capacity_bytes()
    weight_bytes = sum(o.size * itemsize(o.dtype) for o in ops)  # x1 with Buffered(1)

    def _needed_bytes(bb, weight_mult):
        in_tile = 2 * bb * dims_pad[0] * itemsize(x_tile_dtype)   # double-buffered input
        out_tile = 2 * bb * dims_pad[-1] * itemsize(out_dtype)    # double-buffered output
        act = 3 * bb * max(dims_pad) * itemsize(act_dtype)        # live h / y scratch
        return weight_mult * weight_bytes + in_tile + out_tile + act

    while block_b > _SUBLANE and _needed_bytes(block_b, 1) > 0.75 * vmem_cap:
        block_b = _round_up(block_b // 2, _SUBLANE)
    # TODO(synk): if weights alone exceed the VMEM budget, stream the largest
    # layer over a K-tiled grid axis instead of holding all weights resident.

    B_pad = _round_up(B_pad8, block_b)
    grid = (B_pad // block_b,)
    vmem_limit = int(min(vmem_cap,
                         max(_needed_bytes(block_b, 2) + (4 << 20), 32 << 20)))

    # ---- pad input once (in the matmul compute dtype when bf16) ----
    x_p = (jnp.zeros((B_pad, dims_pad[0]), x_tile_dtype)
           .at[:B, :D_in].set(x.astype(x_tile_dtype)))

    # ---- specs ----
    x_spec = pl.BlockSpec((block_b, dims_pad[0]), lambda i: (i, 0))
    out_spec = pl.BlockSpec((block_b, dims_pad[-1]), lambda i: (i, 0))

    def _weight_specs(single_buffered):
        specs = []
        for li in range(num_layers):
            kw = {"pipeline_mode": pl.Buffered(1)} if single_buffered else {}
            # Constant index_map -> weights/bias stay VMEM-resident across tiles.
            specs.append(pl.BlockSpec((dims_pad[li], dims_pad[li + 1]),
                                      lambda i: (0, 0), **kw))
            specs.append(pl.BlockSpec((1, dims_pad[li + 1]),
                                      lambda i: (0, 0), **kw))
        return specs

    flops = 2 * B_pad * sum(dims_pad[i] * dims_pad[i + 1] for i in range(num_layers))
    transcendentals = B_pad * sum(dims_pad[1:-1]) if num_layers > 1 else 0
    bytes_accessed = (x_p.size * itemsize(x_tile_dtype) + weight_bytes
                      + B_pad * dims_pad[-1] * itemsize(out_dtype))

    kernel = functools.partial(_fused_mlp_kernel, num_layers=num_layers,
                               compute_dtype=compute_dtype, act_dtype=act_dtype)

    def _build(single_buffered_weights):
        return pl.pallas_call(
            kernel,
            out_shape=jax.ShapeDtypeStruct((B_pad, dims_pad[-1]), out_dtype),
            grid=grid,
            in_specs=[x_spec] + _weight_specs(single_buffered_weights),
            out_specs=out_spec,
            compiler_params=pltpu.CompilerParams(
                dimension_semantics=("parallel",),
                vmem_limit_bytes=vmem_limit),
            cost_estimate=pl.CostEstimate(
                flops=flops,
                transcendentals=transcendentals,
                bytes_accessed=bytes_accessed),
        )

    try:
        out_p = _build(True)(x_p, *ops)
        out_p = jax.block_until_ready(out_p)
    except Exception:
        # Fallback: this jax build rejects single-buffered BlockSpecs.
        out_p = _build(False)(x_p, *ops)

    return out_p[:B, :dims[-1]]


def init_mlp_params(key, layers):
    """Mirrors MLP.__init__ / _initialize_weights:
    W: kaiming_normal (fan_out, relu) -> std = sqrt(2 / out_features), shape (out, in).
    b: PyTorch Linear default uniform(-1/sqrt(in), 1/sqrt(in)) (not reset by init)."""
    params = []
    for i in range(len(layers) - 1):
        d_in, d_out = layers[i], layers[i + 1]
        key, kw, kb = jax.random.split(key, 3)
        std = (2.0 / d_out) ** 0.5
        w = std * jax.random.normal(kw, (d_out, d_in), dtype=jnp.float32)
        bound = 1.0 / (d_in ** 0.5)
        b = jax.random.uniform(kb, (d_out,), dtype=jnp.float32,
                               minval=-bound, maxval=bound)
        params.append((w, b))
    return params


if __name__ == "__main__":
    key = jax.random.PRNGKey(0)
    layers = [16, 32, 32, 8]        # MLP([16, 32, 32, 8])
    batch = 64

    key, kx = jax.random.split(key)
    x = jax.random.normal(kx, (batch, layers[0]), dtype=jnp.float32)
    params = init_mlp_params(key, layers)

    # Pure-JAX reference (Linear -> Tanh -> Linear -> Tanh -> Linear).
    ref = x
    for i, (w, b) in enumerate(params):
        ref = ref @ w.T + b
        if i < len(params) - 1:
            ref = jnp.tanh(ref)

    # f32 path (strict correctness check).
    prep_f32 = prepare_mlp_params(params, use_bf16=False)
    out = mlp_forward(x, prep_f32)
    out = jax.block_until_ready(out)
    assert out.shape == (batch, layers[-1])
    assert jnp.allclose(out, ref, atol=1e-5, rtol=1e-5)

    # Default path: bf16 weights + bf16 input tiles, f32 accumulation/activations.
    prep_bf16 = prepare_mlp_params(params)          # use_bf16=True default
    out_bf16 = mlp_forward(x, prep_bf16)
    out_bf16 = jax.block_until_ready(out_bf16)
    assert jnp.allclose(out_bf16, ref, atol=1e-1, rtol=1e-1)

    print("KERNEL_OK")
</pallas_src>

<mosaic_0001>
module attributes {stable_mosaic.version = 11 : i64} {
  func.func @_fused_mlp_kernel(%arg0: i32, %arg1: memref<64x128xf32, #tpu.memory_space<vmem>>, %arg2: memref<128x128xf32, #tpu.memory_space<vmem>>, %arg3: memref<1x128xf32, #tpu.memory_space<vmem>>, %arg4: memref<128x128xf32, #tpu.memory_space<vmem>>, %arg5: memref<1x128xf32, #tpu.memory_space<vmem>>, %arg6: memref<128x128xf32, #tpu.memory_space<vmem>>, %arg7: memref<1x128xf32, #tpu.memory_space<vmem>>, %arg8: memref<64x128xf32, #tpu.memory_space<vmem>>) attributes {dimension_semantics = [#tpu.dimension_semantics<parallel>], iteration_bounds = array<i64: 1>, scalar_prefetch = 0 : i64, scratch_operands = 0 : i64, tpu.core_type = #tpu.core_type<tc>, window_params = [{transform_indices = @transform_0, window_bounds = array<i64: 64, 128>}, {pipeline_mode = #tpu.pipeline_mode<synchronous>, transform_indices = @transform_1, window_bounds = array<i64: 128, 128>}, {pipeline_mode = #tpu.pipeline_mode<synchronous>, transform_indices = @transform_2, window_bounds = array<i64: 1, 128>}, {pipeline_mode = #tpu.pipeline_mode<synchronous>, transform_indices = @transform_3, window_bounds = array<i64: 128, 128>}, {pipeline_mode = #tpu.pipeline_mode<synchronous>, transform_indices = @transform_4, window_bounds = array<i64: 1, 128>}, {pipeline_mode = #tpu.pipeline_mode<synchronous>, transform_indices = @transform_5, window_bounds = array<i64: 128, 128>}, {pipeline_mode = #tpu.pipeline_mode<synchronous>, transform_indices = @transform_6, window_bounds = array<i64: 1, 128>}, {transform_indices = @transform_7, window_bounds = array<i64: 64, 128>}]} {
    %c0 = arith.constant 0 : index
    %c0_0 = arith.constant 0 : index
    %0 = vector.load %arg1[%c0, %c0_0] : memref<64x128xf32, #tpu.memory_space<vmem>>, vector<64x128xf32>
    %c0_1 = arith.constant 0 : index
    %c0_2 = arith.constant 0 : index
    %1 = vector.load %arg2[%c0_1, %c0_2] : memref<128x128xf32, #tpu.memory_space<vmem>>, vector<128x128xf32>
    %c0_3 = arith.constant 0 : index
    %c0_4 = arith.constant 0 : index
    %2 = vector.load %arg3[%c0_3, %c0_4] : memref<1x128xf32, #tpu.memory_space<vmem>>, vector<1x128xf32>
    %cst = arith.constant dense<0.000000e+00> : vector<64x128xf32>
    %3 = tpu.matmul %0, %1, %cst {dimension_numbers = #tpu.dot_dimension_numbers<[1], [0], [0], [1], [0, 0, 1, 1], [], []>} : vector<64x128xf32>, vector<128x128xf32>, vector<64x128xf32> -> vector<64x128xf32>
    %4 = vector.broadcast %2 : vector<1x128xf32> to vector<64x128xf32>
    %5 = arith.addf %3, %4 : vector<64x128xf32>
    %6 = math.tanh %5 : vector<64x128xf32>
    %c0_5 = arith.constant 0 : index
    %c0_6 = arith.constant 0 : index
    %7 = vector.load %arg4[%c0_5, %c0_6] : memref<128x128xf32, #tpu.memory_space<vmem>>, vector<128x128xf32>
    %c0_7 = arith.constant 0 : index
    %c0_8 = arith.constant 0 : index
    %8 = vector.load %arg5[%c0_7, %c0_8] : memref<1x128xf32, #tpu.memory_space<vmem>>, vector<1x128xf32>
    %cst_9 = arith.constant dense<0.000000e+00> : vector<64x128xf32>
    %9 = tpu.matmul %6, %7, %cst_9 {dimension_numbers = #tpu.dot_dimension_numbers<[1], [0], [0], [1], [0, 0, 1, 1], [], []>} : vector<64x128xf32>, vector<128x128xf32>, vector<64x128xf32> -> vector<64x128xf32>
    %10 = vector.broadcast %8 : vector<1x128xf32> to vector<64x128xf32>
    %11 = arith.addf %9, %10 : vector<64x128xf32>
    %12 = math.tanh %11 : vector<64x128xf32>
    %c0_10 = arith.constant 0 : index
    %c0_11 = arith.constant 0 : index
    %13 = vector.load %arg6[%c0_10, %c0_11] : memref<128x128xf32, #tpu.memory_space<vmem>>, vector<128x128xf32>
    %c0_12 = arith.constant 0 : index
    %c0_13 = arith.constant 0 : index
    %14 = vector.load %arg7[%c0_12, %c0_13] : memref<1x128xf32, #tpu.memory_space<vmem>>, vector<1x128xf32>
    %cst_14 = arith.constant dense<0.000000e+00> : vector<64x128xf32>
    %15 = tpu.matmul %12, %13, %cst_14 {dimension_numbers = #tpu.dot_dimension_numbers<[1], [0], [0], [1], [0, 0, 1, 1], [], []>} : vector<64x128xf32>, vector<128x128xf32>, vector<64x128xf32> -> vector<64x128xf32>
    %16 = vector.broadcast %14 : vector<1x128xf32> to vector<64x128xf32>
    %17 = arith.addf %15, %16 : vector<64x128xf32>
    %c0_15 = arith.constant 0 : index
    %c0_16 = arith.constant 0 : index
    %18 = vector.load %arg8[%c0_15, %c0_16] : memref<64x128xf32, #tpu.memory_space<vmem>>, vector<64x128xf32>
    tpu.vector_store %arg8[%c0_15, %c0_16], %17 {strides = array<i32>} : memref<64x128xf32, #tpu.memory_space<vmem>>, vector<64x128xf32>,
    return
  }
  func.func @transform_0(%arg0: i32) -> (i32, i32) {
    %c0_i32 = arith.constant 0 : i32
    %c0_i32_0 = arith.constant 0 : i32
    return %arg0, %c0_i32 : i32, i32
  }
  func.func @transform_1(%arg0: i32) -> (i32, i32) {
    %c0_i32 = arith.constant 0 : i32
    %c0_i32_0 = arith.constant 0 : i32
    %c0_i32_1 = arith.constant 0 : i32
    return %c0_i32, %c0_i32_0 : i32, i32
  }
  func.func @transform_2(%arg0: i32) -> (i32, i32) {
    %c0_i32 = arith.constant 0 : i32
    %c0_i32_0 = arith.constant 0 : i32
    %c0_i32_1 = arith.constant 0 : i32
    return %c0_i32, %c0_i32_0 : i32, i32
  }
  func.func @transform_3(%arg0: i32) -> (i32, i32) {
    %c0_i32 = arith.constant 0 : i32
    %c0_i32_0 = arith.constant 0 : i32
    %c0_i32_1 = arith.constant 0 : i32
    return %c0_i32, %c0_i32_0 : i32, i32
  }
  func.func @transform_4(%arg0: i32) -> (i32, i32) {
    %c0_i32 = arith.constant 0 : i32
    %c0_i32_0 = arith.constant 0 : i32
    %c0_i32_1 = arith.constant 0 : i32
    return %c0_i32, %c0_i32_0 : i32, i32
  }
  func.func @transform_5(%arg0: i32) -> (i32, i32) {
    %c0_i32 = arith.constant 0 : i32
    %c0_i32_0 = arith.constant 0 : i32
    %c0_i32_1 = arith.constant 0 : i32
    return %c0_i32, %c0_i32_0 : i32, i32
  }
  func.func @transform_6(%arg0: i32) -> (i32, i32) {
    %c0_i32 = arith.constant 0 : i32
    %c0_i32_0 = arith.constant 0 : i32
    %c0_i32_1 = arith.constant 0 : i32
    return %c0_i32, %c0_i32_0 : i32, i32
  }
  func.func @transform_7(%arg0: i32) -> (i32, i32) {
    %c0_i32 = arith.constant 0 : i32
    %c0_i32_0 = arith.constant 0 : i32
    return %arg0, %c0_i32 : i32, i32
  }
}

module attributes {stable_mosaic.version = 11 : i64} {
  func.func @_fused_mlp_kernel(%arg0: i32, %arg1: memref<64x128xf32, #tpu.memory_space<vmem>>, %arg2: memref<128x128xf32, #tpu.memory_space<vmem>>, %arg3: memref<1x128xf32, #tpu.memory_space<vmem>>, %arg4: memref<128x128xf32, #tpu.memory_space<vmem>>, %arg5: memref<1x128xf32, #tpu.memory_space<vmem>>, %arg6: memref<128x128xf32, #tpu.memory_space<vmem>>, %arg7: memref<1x128xf32, #tpu.memory_space<vmem>>, %arg8: memref<64x128xf32, #tpu.memory_space<vmem>>) attributes {dimension_semantics = [#tpu.dimension_semantics<parallel>], iteration_bounds = array<i64: 1>, scalar_prefetch = 0 : i64, scratch_operands = 0 : i64, tpu.core_type = #tpu.core_type<tc>, window_params = [{transform_indices = @transform_0, window_bounds = array<i64: 64, 128>}, {pipeline_mode = #tpu.pipeline_mode<synchronous>, transform_indices = @transform_1, window_bounds = array<i64: 128, 128>}, {pipeline_mode = #tpu.pipeline_mode<synchronous>, transform_indices = @transform_2, window_bounds = array<i64: 1, 128>}, {pipeline_mode = #tpu.pipeline_mode<synchronous>, transform_indices = @transform_3, window_bounds = array<i64: 128, 128>}, {pipeline_mode = #tpu.pipeline_mode<synchronous>, transform_indices = @transform_4, window_bounds = array<i64: 1, 128>}, {pipeline_mode = #tpu.pipeline_mode<synchronous>, transform_indices = @transform_5, window_bounds = array<i64: 128, 128>}, {pipeline_mode = #tpu.pipeline_mode<synchronous>, transform_indices = @transform_6, window_bounds = array<i64: 1, 128>}, {transform_indices = @transform_7, window_bounds = array<i64: 64, 128>}]} {
    %c0 = arith.constant 0 : index
    %c0_0 = arith.constant 0 : index
    %0 = vector.load %arg1[%c0, %c0_0] : memref<64x128xf32, #tpu.memory_space<vmem>>, vector<64x128xf32>
    %c0_1 = arith.constant 0 : index
    %c0_2 = arith.constant 0 : index
    %1 = vector.load %arg2[%c0_1, %c0_2] : memref<128x128xf32, #tpu.memory_space<vmem>>, vector<128x128xf32>
    %c0_3 = arith.constant 0 : index
    %c0_4 = arith.constant 0 : index
    %2 = vector.load %arg3[%c0_3, %c0_4] : memref<1x128xf32, #tpu.memory_space<vmem>>, vector<1x128xf32>
    %cst = arith.constant dense<0.000000e+00> : vector<64x128xf32>
    %3 = tpu.matmul %0, %1, %cst {dimension_numbers = #tpu.dot_dimension_numbers<[1], [0], [0], [1], [0, 0, 1, 1], [], []>} : vector<64x128xf32>, vector<128x128xf32>, vector<64x128xf32> -> vector<64x128xf32>
    %4 = vector.broadcast %2 : vector<1x128xf32> to vector<64x128xf32>
    %5 = arith.addf %3, %4 : vector<64x128xf32>
    %6 = math.tanh %5 : vector<64x128xf32>
    %c0_5 = arith.constant 0 : index
    %c0_6 = arith.constant 0 : index
    %7 = vector.load %arg4[%c0_5, %c0_6] : memref<128x128xf32, #tpu.memory_space<vmem>>, vector<128x128xf32>
    %c0_7 = arith.constant 0 : index
    %c0_8 = arith.constant 0 : index
    %8 = vector.load %arg5[%c0_7, %c0_8] : memref<1x128xf32, #tpu.memory_space<vmem>>, vector<1x128xf32>
    %cst_9 = arith.constant dense<0.000000e+00> : vector<64x128xf32>
    %9 = tpu.matmul %6, %7, %cst_9 {dimension_numbers = #tpu.dot_dimension_numbers<[1], [0], [0], [1], [0, 0, 1, 1], [], []>} : vector<64x128xf32>, vector<128x128xf32>, vector<64x128xf32> -> vector<64x128xf32>
    %10 = vector.broadcast %8 : vector<1x128xf32> to vector<64x128xf32>
    %11 = arith.addf %9, %10 : vector<64x128xf32>
    %12 = math.tanh %11 : vector<64x128xf32>
    %c0_10 = arith.constant 0 : index
    %c0_11 = arith.constant 0 : index
    %13 = vector.load %arg6[%c0_10, %c0_11] : memref<128x128xf32, #tpu.memory_space<vmem>>, vector<128x128xf32>
    %c0_12 = arith.constant 0 : index
    %c0_13 = arith.constant 0 : index
    %14 = vector.load %arg7[%c0_12, %c0_13] : memref<1x128xf32, #tpu.memory_space<vmem>>, vector<1x128xf32>
    %cst_14 = arith.constant dense<0.000000e+00> : vector<64x128xf32>
    %15 = tpu.matmul %12, %13, %cst_14 {dimension_numbers = #tpu.dot_dimension_numbers<[1], [0], [0], [1], [0, 0, 1, 1], [], []>} : vector<64x128xf32>, vector<128x128xf32>, vector<64x128xf32> -> vector<64x128xf32>
    %16 = vector.broadcast %14 : vector<1x128xf32> to vector<64x128xf32>
    %17 = arith.addf %15, %16 : vector<64x128xf32>
    %c0_15 = arith.constant 0 : index
    %c0_16 = arith.constant 0 : index
    %18 = vector.load %arg8[%c0_15, %c0_16] : memref<64x128xf32, #tpu.memory_space<vmem>>, vector<64x128xf32>
    tpu.vector_store %arg8[%c0_15, %c0_16], %17 {strides = array<i32>} : memref<64x128xf32, #tpu.memory_space<vmem>>, vector<64x128xf32>,
    return
  }
  func.func @transform_0(%arg0: i32) -> (i32, i32) {
    %c0_i32 = arith.constant 0 : i32
    %c0_i32_0 = arith.constant 0 : i32
    return %arg0, %c0_i32 : i32, i32
  }
  func.func @transform_1(%arg0: i32) -> (i32, i32) {
    %c0_i32 = arith.constant 0 : i32
    %c0_i32_0 = arith.constant 0 : i32
    %c0_i32_1 = arith.constant 0 : i32
    return %c0_i32, %c0_i32_0 : i32, i32
  }
  func.func @transform_2(%arg0: i32) -> (i32, i32) {
    %c0_i32 = arith.constant 0 : i32
    %c0_i32_0 = arith.constant 0 : i32
    %c0_i32_1 = arith.constant 0 : i32
    return %c0_i32, %c0_i32_0 : i32, i32
  }
  func.func @transform_3(%arg0: i32) -> (i32, i32) {
    %c0_i32 = arith.constant 0 : i32
    %c0_i32_0 = arith.constant 0 : i32
    %c0_i32_1 = arith.constant 0 : i32
    return %c0_i32, %c0_i32_0 : i32, i32
  }
  func.func @transform_4(%arg0: i32) -> (i32, i32) {
    %c0_i32 = arith.constant 0 : i32
    %c0_i32_0 = arith.constant 0 : i32
    %c0_i32_1 = arith.constant 0 : i32
    return %c0_i32, %c0_i32_0 : i32, i32
  }
  func.func @transform_5(%arg0: i32) -> (i32, i32) {
    %c0_i32 = arith.constant 0 : i32
    %c0_i32_0 = arith.constant 0 : i32
    %c0_i32_1 = arith.constant 0 : i32
    return %c0_i32, %c0_i32_0 : i32, i32
  }
  func.func @transform_6(%arg0: i32) -> (i32, i32) {
    %c0_i32 = arith.constant 0 : i32
    %c0_i32_0 = arith.constant 0 : i32
    %c0_i32_1 = arith.constant 0 : i32
    return %c0_i32, %c0_i32_0 : i32, i32
  }
  func.func @transform_7(%arg0: i32) -> (i32, i32) {
    %c0_i32 = arith.constant 0 : i32
    %c0_i32_0 = arith.constant 0 : i32
    return %arg0, %c0_i32 : i32, i32
  }
}

</mosaic_0001>

<llo_original>
// kernel: tpu_custom_call.1
$region0: #{tpu_custom_call.1}
  #allocation0 [shape = 'u32[]', space=smem, size = 0x4, offset = 0x4, fixed_abs, tag = 'smem constant byte address 0x4 - core index']
  #allocation1 [shape = 'u32[144,128]{1,0:T(1,128)}', space=vmem, size = 0x12000, scoped, tag = 'internal scratch']
  %s0 = inlined_call_operand.hbm [shape: f32[64,128], index: 0, kind: input, shape index: {}]
  %s1 = inlined_call_operand.hbm [shape: f32[128,128], index: 1, kind: input, shape index: {}]
  %s2 = inlined_call_operand.vmem [shape: f32[1,128], index: 2, kind: input, shape index: {}]
  %s3 = inlined_call_operand.hbm [shape: f32[128,128], index: 3, kind: input, shape index: {}]
  %s4 = inlined_call_operand.vmem [shape: f32[1,128], index: 4, kind: input, shape index: {}]
  %s5 = inlined_call_operand.hbm [shape: f32[128,128], index: 5, kind: input, shape index: {}]
  %s6 = inlined_call_operand.vmem [shape: f32[1,128], index: 6, kind: input, shape index: {}]
  %s7 = inlined_call_operand.hbm [shape: f32[64,128], index: 7, kind: output, shape index: {}]
  %s8 = sld [smem:[#allocation0]]
  $region54: #{tpu_custom_call.1} parent=0
    _
  %s10 = ssub.s32 1, %s8
  %s11 = scalar_select 0, %s10, %s8
  $region1: #{tpu_custom_call.1} parent=0
    #allocation2 [shape = 'u8[32768]{0}', space=vmem, size = 0x8000, scoped, tag = 'input window, operand 0, single buffered']
    #allocation3 [shape = 's32[1]{0}', space=sflag, size = 0x4, scoped, tag = 'scoped memory for tpu_custom_call.1']
    #allocation4 [shape = 's32[1]{0}', space=sflag, size = 0x4, scoped, tag = 'scoped memory for tpu_custom_call.1']
    #allocation5 [shape = 'u8[65536]{0}', space=vmem, size = 0x10000, scoped, tag = 'input window, operand 1, single buffered']
    #allocation6 [shape = 's32[1]{0}', space=sflag, size = 0x4, scoped, tag = 'scoped memory for tpu_custom_call.1']
    #allocation7 [shape = 'u8[65536]{0}', space=vmem, size = 0x10000, scoped, tag = 'input window, operand 3, single buffered']
    #allocation8 [shape = 'u8[65536]{0}', space=vmem, size = 0x10000, scoped, tag = 'input window, operand 5, single buffered']
    #allocation9 [shape = 's32[1]{0}', space=sflag, size = 0x4, scoped, tag = 'scoped memory for tpu_custom_call.1']
    #allocation10 [shape = 'u8[32768]{0}', space=vmem, size = 0x8000, scoped, tag = 'output window, operand 0, single buffered']
    %12 = vsyncpa [#allocation3], 0
    %13 = vsyncpa [#allocation6], 0
    %14 = vsyncpa [#allocation9], 0
    %15 = vsyncpa [#allocation4], 0
    // Predicated region
    $region2: #{tpu_custom_call.1} parent=1 // pred_check
      _
    $region3: #{tpu_custom_call.1} parent=1 // pred_check_branch
      %17 = sbr.rel (0) target = $region5
    $region4: #{tpu_custom_call.1} parent=1 // pred_region
      %s19 = ssub.s32 1024, 1024
      %20 = vsyncadd [#allocation3], %s19
      %s21 = sshll.u32 [#allocation2], 4
      %s22 = int_to_ptr.vmem [resolvable:$true] %s21
      %27 = dma.hbm_to_vmem [thread:$0]  %s0, 1024, %s22, [#allocation3], 128, 128, 8
    $region5: #{tpu_custom_call.1} parent=1 // pred_fallthru
      _
    // Predicated region
    $region6: #{tpu_custom_call.1} parent=1 // pred_check
      _
    $region7: #{tpu_custom_call.1} parent=1 // pred_check_branch
      %29 = sbr.rel (0) target = $region9
    $region8: #{tpu_custom_call.1} parent=1 // pred_region
      %s31 = ssub.s32 2048, 2048
      %32 = vsyncadd [#allocation6], %s31
      %s33 = sshll.u32 [#allocation5], 4
      %s34 = int_to_ptr.vmem [resolvable:$true] %s33
      %39 = dma.hbm_to_vmem [thread:$0]  %s1, 2048, %s34, [#allocation6], 128, 128, 8
    $region9: #{tpu_custom_call.1} parent=1 // pred_fallthru
      _
    // Predicated region
    $region10: #{tpu_custom_call.1} parent=1 // pred_check
      _
    $region11: #{tpu_custom_call.1} parent=1 // pred_check_branch
      %41 = sbr.rel (0) target = $region13
    $region12: #{tpu_custom_call.1} parent=1 // pred_region
      _
    $region13: #{tpu_custom_call.1} parent=1 // pred_fallthru
      _
    // Predicated region
    $region14: #{tpu_custom_call.1} parent=1 // pred_check
      _
    $region15: #{tpu_custom_call.1} parent=1 // pred_check_branch
      %43 = sbr.rel (0) target = $region17
    $region16: #{tpu_custom_call.1} parent=1 // pred_region
      %s45 = ssub.s32 2048, 2048
      %46 = vsyncadd [#allocation6], %s45
      %s47 = sshll.u32 [#allocation7], 4
      %s48 = int_to_ptr.vmem [resolvable:$true] %s47
      %53 = dma.hbm_to_vmem [thread:$0]  %s3, 2048, %s48, [#allocation6], 128, 128, 8
    $region17: #{tpu_custom_call.1} parent=1 // pred_fallthru
      _
    // Predicated region
    $region18: #{tpu_custom_call.1} parent=1 // pred_check
      _
    $region19: #{tpu_custom_call.1} parent=1 // pred_check_branch
      %55 = sbr.rel (0) target = $region21
    $region20: #{tpu_custom_call.1} parent=1 // pred_region
      _
    $region21: #{tpu_custom_call.1} parent=1 // pred_fallthru
      _
    // Predicated region
    $region22: #{tpu_custom_call.1} parent=1 // pred_check
      _
    $region23: #{tpu_custom_call.1} parent=1 // pred_check_branch
      %57 = sbr.rel (0) target = $region25
    $region24: #{tpu_custom_call.1} parent=1 // pred_region
      %s59 = ssub.s32 2048, 2048
      %60 = vsyncadd [#allocation9], %s59
      %s61 = sshll.u32 [#allocation8], 4
      %s62 = int_to_ptr.vmem [resolvable:$true] %s61
      %67 = dma.hbm_to_vmem [thread:$0]  %s5, 2048, %s62, [#allocation9], 128, 128, 8
    $region25: #{tpu_custom_call.1} parent=1 // pred_fallthru
      _
    // Predicated region
    $region26: #{tpu_custom_call.1} parent=1 // pred_check
      _
    $region27: #{tpu_custom_call.1} parent=1 // pred_check_branch
      %69 = sbr.rel (0) target = $region29
    $region28: #{tpu_custom_call.1} parent=1 // pred_region
      _
    $region29: #{tpu_custom_call.1} parent=1 // pred_fallthru
      _
    // Predicated region
    $region30: #{tpu_custom_call.1} parent=1 // pred_check
      _
    $region31: #{tpu_custom_call.1} parent=1 // pred_check_branch
      %71 = sbr.rel (0) target = $region33
    $region32: #{tpu_custom_call.1} parent=1 // pred_region
      %72 = dma.done [#allocation3], 1024
    $region33: #{tpu_custom_call.1} parent=1 // pred_fallthru
      _
    // Predicated region
    $region34: #{tpu_custom_call.1} parent=1 // pred_check
      _
    $region35: #{tpu_custom_call.1} parent=1 // pred_check_branch
      %74 = sbr.rel (0) target = $region37
    $region36: #{tpu_custom_call.1} parent=1 // pred_region
      %75 = dma.done [#allocation6], 2048
    $region37: #{tpu_custom_call.1} parent=1 // pred_fallthru
      _
    // Predicated region
    $region38: #{tpu_custom_call.1} parent=1 // pred_check
      _
    $region39: #{tpu_custom_call.1} parent=1 // pred_check_branch
      %77 = sbr.rel (0) target = $region41
    $region40: #{tpu_custom_call.1} parent=1 // pred_region
      %78 = dma.done [#allocation6], 2048
    $region41: #{tpu_custom_call.1} parent=1 // pred_fallthru
      _
    // Predicated region
    $region42: #{tpu_custom_call.1} parent=1 // pred_check
      _
    $region43: #{tpu_custom_call.1} parent=1 // pred_check_branch
      %80 = sbr.rel (0) target = $region45
    $region44: #{tpu_custom_call.1} parent=1 // pred_region
      %81 = dma.done [#allocation9], 2048
    $region45: #{tpu_custom_call.1} parent=1 // pred_fallthru
      _
    %v82 = vld [vmem:[#allocation2] sm:$0xff]
    %v83 = vld [vmem:[#allocation2 + $0x8] sm:$0xff]
    %v84 = vld [vmem:[#allocation2 + $0x10] sm:$0xff]
    %v85 = vld [vmem:[#allocation2 + $0x18] sm:$0xff]
    %v86 = vld [vmem:[#allocation2 + $0x20] sm:$0xff]
    %v87 = vld [vmem:[#allocation2 + $0x28] sm:$0xff]
    %v88 = vld [vmem:[#allocation2 + $0x30] sm:$0xff]
    %v89 = vld [vmem:[#allocation2 + $0x38] sm:$0xff]
    %v90 = vld [vmem:[#allocation5] sm:$0xff]
    %v91 = vld [vmem:[#allocation5 + $0x8] sm:$0xff]
    %v92 = vld [vmem:[#allocation5 + $0x10] sm:$0xff]
    %v93 = vld [vmem:[#allocation5 + $0x18] sm:$0xff]
    %v94 = vld [vmem:[#allocation5 + $0x20] sm:$0xff]
    %v95 = vld [vmem:[#allocation5 + $0x28] sm:$0xff]
    %v96 = vld [vmem:[#allocation5 + $0x30] sm:$0xff]
    %v97 = vld [vmem:[#allocation5 + $0x38] sm:$0xff]
    %v98 = vld [vmem:[#allocation5 + $0x40] sm:$0xff]
    %v99 = vld [vmem:[#allocation5 + $0x48] sm:$0xff]
    %v100 = vld [vmem:[#allocation5 + $0x50] sm:$0xff]
    %v101 = vld [vmem:[#allocation5 + $0x58] sm:$0xff]
    %v102 = vld [vmem:[#allocation5 + $0x60] sm:$0xff]
    %v103 = vld [vmem:[#allocation5 + $0x68] sm:$0xff]
    %v104 = vld [vmem:[#allocation5 + $0x70] sm:$0xff]
    %v105 = vld [vmem:[#allocation5 + $0x78] sm:$0xff]
    %v106 = vld [vmem:[%s2] sm:$0x1]
    %v108 = vlaneseq
    %v109 = vshrl.u32 %v108, 7
    %v110 = vsub.s32 0, %v109
    %v111 = vrot.slane %v106, %v110
    %113 = vmatprep.subr.mxu0 0.0
    %114 = vmatpush1.msra.mxu0 %v90
    %115 = vmatprep.subr.mxu0 0.0
    %116 = vmatpush1.msra.mxu0 %v91
    %117 = vmatprep.subr.mxu0 0.0
    %118 = vmatpush1.msra.mxu0 %v92
    %119 = vmatprep.subr.mxu0 0.0
    %120 = vmatpush1.msra.mxu0 %v93
    %121 = vmatprep.subr.mxu0 0.0
    %122 = vmatpush1.msra.mxu0 %v94
    %123 = vmatprep.subr.mxu0 0.0
    %124 = vmatpush1.msra.mxu0 %v95
    %125 = vmatprep.subr.mxu0 0.0
    %126 = vmatpush1.msra.mxu0 %v96
    %127 = vmatprep.subr.mxu0 0.0
    %128 = vmatpush1.msra.mxu0 %v97
    %129 = vmatprep.subr.mxu0 0.0
    %130 = vmatpush1.msra.mxu0 %v98
    %131 = vmatprep.subr.mxu0 0.0
    %132 = vmatpush1.msra.mxu0 %v99
    %133 = vmatprep.subr.mxu0 0.0
    %134 = vmatpush1.msra.mxu0 %v100
    %135 = vmatprep.subr.mxu0 0.0
    %136 = vmatpush1.msra.mxu0 %v101
    %137 = vmatprep.subr.mxu0 0.0
    %138 = vmatpush1.msra.mxu0 %v102
    %139 = vmatprep.subr.mxu0 0.0
    %140 = vmatpush1.msra.mxu0 %v103
    %141 = vmatprep.subr.mxu0 0.0
    %142 = vmatpush1.msra.mxu0 %v104
    %143 = vmatprep.subr.mxu0 0.0
    %144 = vmatpush1.msra.mxu0 %v105
    %145 = vmatprep.subr.mxu0 0.0
    %146 = vmatpush1.msra.mxu0 0.0
    %147 = vmatprep.subr.mxu0 0.0
    %148 = vmatpush1.msra.mxu0 0.0
    %149 = vmatprep.subr.mxu0 0.0
    %150 = vmatpush1.msra.mxu0 0.0
    %151 = vmatprep.subr.mxu0 0.0
    %152 = vmatpush1.msra.mxu0 0.0
    %153 = vmatprep.subr.mxu0 0.0
    %154 = vmatpush1.msra.mxu0 0.0
    %155 = vmatprep.subr.mxu0 0.0
    %156 = vmatpush1.msra.mxu0 0.0
    %157 = vmatprep.subr.mxu0 0.0
    %158 = vmatpush1.msra.mxu0 0.0
    %159 = vmatprep.subr.mxu0 0.0
    %160 = vmatpush1.msra.mxu0 0.0
    %161 = vmatprep.subr.mxu0 0.0
    %162 = vmatpush1.msra.mxu0 0.0
    %163 = vmatprep.subr.mxu0 0.0
    %164 = vmatpush1.msra.mxu0 0.0
    %165 = vmatprep.subr.mxu0 0.0
    %166 = vmatpush1.msra.mxu0 0.0
    %167 = vmatprep.subr.mxu0 0.0
    %168 = vmatpush1.msra.mxu0 0.0
    %169 = vmatprep.subr.mxu0 0.0
    %170 = vmatpush1.msra.mxu0 0.0
    %171 = vmatprep.subr.mxu0 0.0
    %172 = vmatpush1.msra.mxu0 0.0
    %173 = vmatprep.subr.mxu0 0.0
    %174 = vmatpush1.msra.mxu0 0.0
    %175 = vmatprep.subr.mxu0 0.0
    %176 = vmatpush1.msra.mxu0 0.0
    %177 = vmatprep.mubr.f32.mxu0 0.0
    %178 = vmatmul.mubr.f32.gmra.mrb[0].mxu0 %v82
    %v179 = vpop.f32.mrb[0].mxu0
    %v180 = vadd.f32 %v111, %v179
    %v181 = vpop.f32.mrb[0].mxu0
    %182 = vmatprep.mubr.f32.mxu0 0.0
    %183 = vmatmul.mubr.f32.gmra.mrb[0].mxu0 %v83
    %v184 = vpop.f32.mrb[0].mxu0
    %v185 = vadd.f32 %v111, %v184
    %v186 = vpop.f32.mrb[0].mxu0
    %187 = vmatprep.mubr.f32.mxu0 0.0
    %188 = vmatmul.mubr.f32.gmra.mrb[0].mxu0 %v84
    %v189 = vpop.f32.mrb[0].mxu0
    %v190 = vadd.f32 %v111, %v189
    %v191 = vpop.f32.mrb[0].mxu0
    %192 = vmatprep.mubr.f32.mxu0 0.0
    %193 = vmatmul.mubr.f32.gmra.mrb[0].mxu0 %v85
    %v194 = vpop.f32.mrb[0].mxu0
    %v195 = vadd.f32 %v111, %v194
    %v196 = vpop.f32.mrb[0].mxu0
    %197 = vmatprep.mubr.f32.mxu0 0.0
    %198 = vmatmul.mubr.f32.gmra.mrb[0].mxu0 %v86
    %v199 = vpop.f32.mrb[0].mxu0
    %v200 = vadd.f32 %v111, %v199
    %v201 = vpop.f32.mrb[0].mxu0
    %202 = vmatprep.mubr.f32.mxu0 0.0
    %203 = vmatmul.mubr.f32.gmra.mrb[0].mxu0 %v87
    %v204 = vpop.f32.mrb[0].mxu0
    %v205 = vadd.f32 %v111, %v204
    %v206 = vpop.f32.mrb[0].mxu0
    %207 = vmatprep.mubr.f32.mxu0 0.0
    %208 = vmatmul.mubr.f32.gmra.mrb[0].mxu0 %v88
    %v209 = vpop.f32.mrb[0].mxu0
    %v210 = vadd.f32 %v111, %v209
    %v211 = vpop.f32.mrb[0].mxu0
    %212 = vmatprep.mubr.f32.mxu0 0.0
    %213 = vmatmul.mubr.f32.gmra.mrb[0].mxu0 %v89
    %v214 = vpop.f32.mrb[0].mxu0
    %v215 = vadd.f32 %v111, %v214
    %v216 = vpop.f32.mrb[0].mxu0
    %217 = vdwg.mxu0
    %v218 = vtanh.pop %v180
    %v219 = vtanh.pop %v185
    %v220 = vtanh.pop %v190
    %v221 = vtanh.pop %v195
    %v222 = vtanh.pop %v200
    %v223 = vtanh.pop %v205
    %v224 = vtanh.pop %v210
    %v225 = vtanh.pop %v215
    %v226 = vld [vmem:[#allocation7] sm:$0xff]
    %v227 = vld [vmem:[#allocation7 + $0x8] sm:$0xff]
    %v228 = vld [vmem:[#allocation7 + $0x10] sm:$0xff]
    %v229 = vld [vmem:[#allocation7 + $0x18] sm:$0xff]
    %v230 = vld [vmem:[#allocation7 + $0x20] sm:$0xff]
    %v231 = vld [vmem:[#allocation7 + $0x28] sm:$0xff]
    %v232 = vld [vmem:[#allocation7 + $0x30] sm:$0xff]
    %v233 = vld [vmem:[#allocation7 + $0x38] sm:$0xff]
    %v234 = vld [vmem:[#allocation7 + $0x40] sm:$0xff]
    %v235 = vld [vmem:[#allocation7 + $0x48] sm:$0xff]
    %v236 = vld [vmem:[#allocation7 + $0x50] sm:$0xff]
    %v237 = vld [vmem:[#allocation7 + $0x58] sm:$0xff]
    %v238 = vld [vmem:[#allocation7 + $0x60] sm:$0xff]
    %v239 = vld [vmem:[#allocation7 + $0x68] sm:$0xff]
    %v240 = vld [vmem:[#allocation7 + $0x70] sm:$0xff]
    %v241 = vld [vmem:[#allocation7 + $0x78] sm:$0xff]
    %v242 = vld [vmem:[%s4] sm:$0x1]
    %v244 = vlaneseq
    %v245 = vshrl.u32 %v244, 7
    %v246 = vsub.s32 0, %v245
    %v247 = vrot.slane %v242, %v246
    %249 = vmatprep.subr.mxu0 0.0
    %250 = vmatpush1.msra.mxu0 %v226
    %251 = vmatprep.subr.mxu0 0.0
    %252 = vmatpush1.msra.mxu0 %v227
    %253 = vmatprep.subr.mxu0 0.0
    %254 = vmatpush1.msra.mxu0 %v228
    %255 = vmatprep.subr.mxu0 0.0
    %256 = vmatpush1.msra.mxu0 %v229
    %257 = vmatprep.subr.mxu0 0.0
    %258 = vmatpush1.msra.mxu0 %v230
    %259 = vmatprep.subr.mxu0 0.0
    %260 = vmatpush1.msra.mxu0 %v231
    %261 = vmatprep.subr.mxu0 0.0
    %262 = vmatpush1.msra.mxu0 %v232
    %263 = vmatprep.subr.mxu0 0.0
    %264 = vmatpush1.msra.mxu0 %v233
    %265 = vmatprep.subr.mxu0 0.0
    %266 = vmatpush1.msra.mxu0 %v234
    %267 = vmatprep.subr.mxu0 0.0
    %268 = vmatpush1.msra.mxu0 %v235
    %269 = vmatprep.subr.mxu0 0.0
    %270 = vmatpush1.msra.mxu0 %v236
    %271 = vmatprep.subr.mxu0 0.0
    %272 = vmatpush1.msra.mxu0 %v237
    %273 = vmatprep.subr.mxu0 0.0
    %274 = vmatpush1.msra.mxu0 %v238
    %275 = vmatprep.subr.mxu0 0.0
    %276 = vmatpush1.msra.mxu0 %v239
    %277 = vmatprep.subr.mxu0 0.0
    %278 = vmatpush1.msra.mxu0 %v240
    %279 = vmatprep.subr.mxu0 0.0
    %280 = vmatpush1.msra.mxu0 %v241
    %281 = vmatprep.subr.mxu0 0.0
    %282 = vmatpush1.msra.mxu0 0.0
    %283 = vmatprep.subr.mxu0 0.0
    %284 = vmatpush1.msra.mxu0 0.0
    %285 = vmatprep.subr.mxu0 0.0
    %286 = vmatpush1.msra.mxu0 0.0
    %287 = vmatprep.subr.mxu0 0.0
    %288 = vmatpush1.msra.mxu0 0.0
    %289 = vmatprep.subr.mxu0 0.0
    %290 = vmatpush1.msra.mxu0 0.0
    %291 = vmatprep.subr.mxu0 0.0
    %292 = vmatpush1.msra.mxu0 0.0
    %293 = vmatprep.subr.mxu0 0.0
    %294 = vmatpush1.msra.mxu0 0.0
    %295 = vmatprep.subr.mxu0 0.0
    %296 = vmatpush1.msra.mxu0 0.0
    %297 = vmatprep.subr.mxu0 0.0
    %298 = vmatpush1.msra.mxu0 0.0
    %299 = vmatprep.subr.mxu0 0.0
    %300 = vmatpush1.msra.mxu0 0.0
    %301 = vmatprep.subr.mxu0 0.0
    %302 = vmatpush1.msra.mxu0 0.0
    %303 = vmatprep.subr.mxu0 0.0
    %304 = vmatpush1.msra.mxu0 0.0
    %305 = vmatprep.subr.mxu0 0.0
    %306 = vmatpush1.msra.mxu0 0.0
    %307 = vmatprep.subr.mxu0 0.0
    %308 = vmatpush1.msra.mxu0 0.0
    %309 = vmatprep.subr.mxu0 0.0
    %310 = vmatpush1.msra.mxu0 0.0
    %311 = vmatprep.subr.mxu0 0.0
    %312 = vmatpush1.msra.mxu0 0.0
    %313 = vmatprep.mubr.f32.mxu0 0.0
    %314 = vmatmul.mubr.f32.gmra.mrb[0].mxu0 %v218
    %v315 = vpop.f32.mrb[0].mxu0
    %v316 = vadd.f32 %v247, %v315
    %v317 = vpop.f32.mrb[0].mxu0
    %318 = vmatprep.mubr.f32.mxu0 0.0
    %319 = vmatmul.mubr.f32.gmra.mrb[0].mxu0 %v219
    %v320 = vpop.f32.mrb[0].mxu0
    %v321 = vadd.f32 %v247, %v320
    %v322 = vpop.f32.mrb[0].mxu0
    %323 = vmatprep.mubr.f32.mxu0 0.0
    %324 = vmatmul.mubr.f32.gmra.mrb[0].mxu0 %v220
    %v325 = vpop.f32.mrb[0].mxu0
    %v326 = vadd.f32 %v247, %v325
    %v327 = vpop.f32.mrb[0].mxu0
    %328 = vmatprep.mubr.f32.mxu0 0.0
    %329 = vmatmul.mubr.f32.gmra.mrb[0].mxu0 %v221
    %v330 = vpop.f32.mrb[0].mxu0
    %v331 = vadd.f32 %v247, %v330
    %v332 = vpop.f32.mrb[0].mxu0
    %333 = vmatprep.mubr.f32.mxu0 0.0
    %334 = vmatmul.mubr.f32.gmra.mrb[0].mxu0 %v222
    %v335 = vpop.f32.mrb[0].mxu0
    %v336 = vadd.f32 %v247, %v335
    %v337 = vpop.f32.mrb[0].mxu0
    %338 = vmatprep.mubr.f32.mxu0 0.0
    %339 = vmatmul.mubr.f32.gmra.mrb[0].mxu0 %v223
    %v340 = vpop.f32.mrb[0].mxu0
    %v341 = vadd.f32 %v247, %v340
    %v342 = vpop.f32.mrb[0].mxu0
    %343 = vmatprep.mubr.f32.mxu0 0.0
    %344 = vmatmul.mubr.f32.gmra.mrb[0].mxu0 %v224
    %v345 = vpop.f32.mrb[0].mxu0
    %v346 = vadd.f32 %v247, %v345
    %v347 = vpop.f32.mrb[0].mxu0
    %348 = vmatprep.mubr.f32.mxu0 0.0
    %349 = vmatmul.mubr.f32.gmra.mrb[0].mxu0 %v225
    %v350 = vpop.f32.mrb[0].mxu0
    %v351 = vadd.f32 %v247, %v350
    %v352 = vpop.f32.mrb[0].mxu0
    %353 = vdwg.mxu0
    %v354 = vtanh.pop %v316
    %v355 = vtanh.pop %v321
    %v356 = vtanh.pop %v326
    %v357 = vtanh.pop %v331
    %v358 = vtanh.pop %v336
    %v359 = vtanh.pop %v341
    %v360 = vtanh.pop %v346
    %v361 = vtanh.pop %v351
    %v362 = vld [vmem:[#allocation8] sm:$0xff]
    %v363 = vld [vmem:[#allocation8 + $0x8] sm:$0xff]
    %v364 = vld [vmem:[#allocation8 + $0x10] sm:$0xff]
    %v365 = vld [vmem:[#allocation8 + $0x18] sm:$0xff]
    %v366 = vld [vmem:[#allocation8 + $0x20] sm:$0xff]
    %v367 = vld [vmem:[#allocation8 + $0x28] sm:$0xff]
    %v368 = vld [vmem:[#allocation8 + $0x30] sm:$0xff]
    %v369 = vld [vmem:[#allocation8 + $0x38] sm:$0xff]
    %v370 = vld [vmem:[#allocation8 + $0x40] sm:$0xff]
    %v371 = vld [vmem:[#allocation8 + $0x48] sm:$0xff]
    %v372 = vld [vmem:[#allocation8 + $0x50] sm:$0xff]
    %v373 = vld [vmem:[#allocation8 + $0x58] sm:$0xff]
    %v374 = vld [vmem:[#allocation8 + $0x60] sm:$0xff]
    %v375 = vld [vmem:[#allocation8 + $0x68] sm:$0xff]
    %v376 = vld [vmem:[#allocation8 + $0x70] sm:$0xff]
    %v377 = vld [vmem:[#allocation8 + $0x78] sm:$0xff]
    %v378 = vld [vmem:[%s6] sm:$0x1]
    %v380 = vlaneseq
    %v381 = vshrl.u32 %v380, 7
    %v382 = vsub.s32 0, %v381
    %v383 = vrot.slane %v378, %v382
    %385 = vmatprep.subr.mxu0 0.0
    %386 = vmatpush1.msra.mxu0 %v362
    %387 = vmatprep.subr.mxu0 0.0
    %388 = vmatpush1.msra.mxu0 %v363
    %389 = vmatprep.subr.mxu0 0.0
    %390 = vmatpush1.msra.mxu0 %v364
    %391 = vmatprep.subr.mxu0 0.0
    %392 = vmatpush1.msra.mxu0 %v365
    %393 = vmatprep.subr.mxu0 0.0
    %394 = vmatpush1.msra.mxu0 %v366
    %395 = vmatprep.subr.mxu0 0.0
    %396 = vmatpush1.msra.mxu0 %v367
    %397 = vmatprep.subr.mxu0 0.0
    %398 = vmatpush1.msra.mxu0 %v368
    %399 = vmatprep.subr.mxu0 0.0
    %400 = vmatpush1.msra.mxu0 %v369
    %401 = vmatprep.subr.mxu0 0.0
    %402 = vmatpush1.msra.mxu0 %v370
    %403 = vmatprep.subr.mxu0 0.0
    %404 = vmatpush1.msra.mxu0 %v371
    %405 = vmatprep.subr.mxu0 0.0
    %406 = vmatpush1.msra.mxu0 %v372
    %407 = vmatprep.subr.mxu0 0.0
    %408 = vmatpush1.msra.mxu0 %v373
    %409 = vmatprep.subr.mxu0 0.0
    %410 = vmatpush1.msra.mxu0 %v374
    %411 = vmatprep.subr.mxu0 0.0
    %412 = vmatpush1.msra.mxu0 %v375
    %413 = vmatprep.subr.mxu0 0.0
    %414 = vmatpush1.msra.mxu0 %v376
    %415 = vmatprep.subr.mxu0 0.0
    %416 = vmatpush1.msra.mxu0 %v377
    %417 = vmatprep.subr.mxu0 0.0
    %418 = vmatpush1.msra.mxu0 0.0
    %419 = vmatprep.subr.mxu0 0.0
    %420 = vmatpush1.msra.mxu0 0.0
    %421 = vmatprep.subr.mxu0 0.0
    %422 = vmatpush1.msra.mxu0 0.0
    %423 = vmatprep.subr.mxu0 0.0
    %424 = vmatpush1.msra.mxu0 0.0
    %425 = vmatprep.subr.mxu0 0.0
    %426 = vmatpush1.msra.mxu0 0.0
    %427 = vmatprep.subr.mxu0 0.0
    %428 = vmatpush1.msra.mxu0 0.0
    %429 = vmatprep.subr.mxu0 0.0
    %430 = vmatpush1.msra.mxu0 0.0
    %431 = vmatprep.subr.mxu0 0.0
    %432 = vmatpush1.msra.mxu0 0.0
    %433 = vmatprep.subr.mxu0 0.0
    %434 = vmatpush1.msra.mxu0 0.0
    %435 = vmatprep.subr.mxu0 0.0
    %436 = vmatpush1.msra.mxu0 0.0
    %437 = vmatprep.subr.mxu0 0.0
    %438 = vmatpush1.msra.mxu0 0.0
    %439 = vmatprep.subr.mxu0 0.0
    %440 = vmatpush1.msra.mxu0 0.0
    %441 = vmatprep.subr.mxu0 0.0
    %442 = vmatpush1.msra.mxu0 0.0
    %443 = vmatprep.subr.mxu0 0.0
    %444 = vmatpush1.msra.mxu0 0.0
    %445 = vmatprep.subr.mxu0 0.0
    %446 = vmatpush1.msra.mxu0 0.0
    %447 = vmatprep.subr.mxu0 0.0
    %448 = vmatpush1.msra.mxu0 0.0
    %449 = vmatprep.mubr.f32.mxu0 0.0
    %450 = vmatmul.mubr.f32.gmra.mrb[0].mxu0 %v354
    %v451 = vpop.f32.mrb[0].mxu0
    %v452 = vadd.f32 %v383, %v451
    %v453 = vpop.f32.mrb[0].mxu0
    %454 = vmatprep.mubr.f32.mxu0 0.0
    %455 = vmatmul.mubr.f32.gmra.mrb[0].mxu0 %v355
    %v456 = vpop.f32.mrb[0].mxu0
    %v457 = vadd.f32 %v383, %v456
    %v458 = vpop.f32.mrb[0].mxu0
    %459 = vmatprep.mubr.f32.mxu0 0.0
    %460 = vmatmul.mubr.f32.gmra.mrb[0].mxu0 %v356
    %v461 = vpop.f32.mrb[0].mxu0
    %v462 = vadd.f32 %v383, %v461
    %v463 = vpop.f32.mrb[0].mxu0
    %464 = vmatprep.mubr.f32.mxu0 0.0
    %465 = vmatmul.mubr.f32.gmra.mrb[0].mxu0 %v357
    %v466 = vpop.f32.mrb[0].mxu0
    %v467 = vadd.f32 %v383, %v466
    %v468 = vpop.f32.mrb[0].mxu0
    %469 = vmatprep.mubr.f32.mxu0 0.0
    %470 = vmatmul.mubr.f32.gmra.mrb[0].mxu0 %v358
    %v471 = vpop.f32.mrb[0].mxu0
    %v472 = vadd.f32 %v383, %v471
    %v473 = vpop.f32.mrb[0].mxu0
    %474 = vmatprep.mubr.f32.mxu0 0.0
    %475 = vmatmul.mubr.f32.gmra.mrb[0].mxu0 %v359
    %v476 = vpop.f32.mrb[0].mxu0
    %v477 = vadd.f32 %v383, %v476
    %v478 = vpop.f32.mrb[0].mxu0
    %479 = vmatprep.mubr.f32.mxu0 0.0
    %480 = vmatmul.mubr.f32.gmra.mrb[0].mxu0 %v360
    %v481 = vpop.f32.mrb[0].mxu0
    %v482 = vadd.f32 %v383, %v481
    %v483 = vpop.f32.mrb[0].mxu0
    %484 = vmatprep.mubr.f32.mxu0 0.0
    %485 = vmatmul.mubr.f32.gmra.mrb[0].mxu0 %v361
    %v486 = vpop.f32.mrb[0].mxu0
    %v487 = vadd.f32 %v383, %v486
    %v488 = vpop.f32.mrb[0].mxu0
    %489 = vdwg.mxu0
    %490 = vst [vmem:[#allocation10] sm:$0xff] %v452
    %491 = vst [vmem:[#allocation10 + $0x8] sm:$0xff] %v457
    %492 = vst [vmem:[#allocation10 + $0x10] sm:$0xff] %v462
    %493 = vst [vmem:[#allocation10 + $0x18] sm:$0xff] %v467
    %494 = vst [vmem:[#allocation10 + $0x20] sm:$0xff] %v472
    %495 = vst [vmem:[#allocation10 + $0x28] sm:$0xff] %v477
    %496 = vst [vmem:[#allocation10 + $0x30] sm:$0xff] %v482
    %497 = vst [vmem:[#allocation10 + $0x38] sm:$0xff] %v487
    // Predicated region
    $region46: #{tpu_custom_call.1} parent=1 // pred_check
      _
    $region47: #{tpu_custom_call.1} parent=1 // pred_check_branch
      %499 = sbr.rel (0) target = $region49
    $region48: #{tpu_custom_call.1} parent=1 // pred_region
      %s501 = ssub.s32 1024, 1024
      %502 = vsyncadd [#allocation4], %s501
      %s503 = sshll.u32 [#allocation10], 4
      %s504 = int_to_ptr.vmem [resolvable:$true] %s503
      %509 = dma.vmem_to_hbm [thread:$0]  %s504, 1024, %s7, [#allocation4], 128, 128, 8
    $region49: #{tpu_custom_call.1} parent=1 // pred_fallthru
      _
    // Predicated region
    $region50: #{tpu_custom_call.1} parent=1 // pred_check
      _
    $region51: #{tpu_custom_call.1} parent=1 // pred_check_branch
      %511 = sbr.rel (0) target = $region53
    $region52: #{tpu_custom_call.1} parent=1 // pred_region
      %512 = dma.done [#allocation4], 1024
    $region53: #{tpu_custom_call.1} parent=1 // pred_fallthru
      _
    %513 = vsyncpa [#allocation3], 1
    %514 = vsyncpa [#allocation6], 1
    %515 = vsyncpa [#allocation9], 1
    %516 = vsyncpa [#allocation4], 1

// kernel: tpu_custom_call.1
$region0: #{tpu_custom_call.1}
  #allocation0 [shape = 'u32[]', space=smem, size = 0x4, offset = 0x4, fixed_abs, tag = 'smem constant byte address 0x4 - core index']
  #allocation1 [shape = 'u32[144,128]{1,0:T(1,128)}', space=vmem, size = 0x12000, scoped, tag = 'internal scratch']
  %s0 = inlined_call_operand.hbm [shape: f32[64,128], index: 0, kind: input, shape index: {}]
  %s1 = inlined_call_operand.hbm [shape: f32[128,128], index: 1, kind: input, shape index: {}]
  %s2 = inlined_call_operand.vmem [shape: f32[1,128], index: 2, kind: input, shape index: {}]
  %s3 = inlined_call_operand.hbm [shape: f32[128,128], index: 3, kind: input, shape index: {}]
  %s4 = inlined_call_operand.vmem [shape: f32[1,128], index: 4, kind: input, shape index: {}]
  %s5 = inlined_call_operand.hbm [shape: f32[128,128], index: 5, kind: input, shape index: {}]
  %s6 = inlined_call_operand.vmem [shape: f32[1,128], index: 6, kind: input, shape index: {}]
  %s7 = inlined_call_operand.hbm [shape: f32[64,128], index: 7, kind: output, shape index: {}]
  %s8 = sld [smem:[#allocation0]]
  $region54: #{tpu_custom_call.1} parent=0
    _
  %s10 = ssub.s32 1, %s8
  %s11 = scalar_select 0, %s10, %s8
  $region1: #{tpu_custom_call.1} parent=0
    #allocation2 [shape = 'u8[32768]{0}', space=vmem, size = 0x8000, scoped, tag = 'input window, operand 0, single buffered']
    #allocation3 [shape = 's32[1]{0}', space=sflag, size = 0x4, scoped, tag = 'scoped memory for tpu_custom_call.1']
    #allocation4 [shape = 's32[1]{0}', space=sflag, size = 0x4, scoped, tag = 'scoped memory for tpu_custom_call.1']
    #allocation5 [shape = 'u8[65536]{0}', space=vmem, size = 0x10000, scoped, tag = 'input window, operand 1, single buffered']
    #allocation6 [shape = 's32[1]{0}', space=sflag, size = 0x4, scoped, tag = 'scoped memory for tpu_custom_call.1']
    #allocation7 [shape = 'u8[65536]{0}', space=vmem, size = 0x10000, scoped, tag = 'input window, operand 3, single buffered']
    #allocation8 [shape = 'u8[65536]{0}', space=vmem, size = 0x10000, scoped, tag = 'input window, operand 5, single buffered']
    #allocation9 [shape = 's32[1]{0}', space=sflag, size = 0x4, scoped, tag = 'scoped memory for tpu_custom_call.1']
    #allocation10 [shape = 'u8[32768]{0}', space=vmem, size = 0x8000, scoped, tag = 'output window, operand 0, single buffered']
    %12 = vsyncpa [#allocation3], 0
    %13 = vsyncpa [#allocation6], 0
    %14 = vsyncpa [#allocation9], 0
    %15 = vsyncpa [#allocation4], 0
    // Predicated region
    $region2: #{tpu_custom_call.1} parent=1 // pred_check
      _
    $region3: #{tpu_custom_call.1} parent=1 // pred_check_branch
      %17 = sbr.rel (0) target = $region5
    $region4: #{tpu_custom_call.1} parent=1 // pred_region
      %s19 = ssub.s32 1024, 1024
      %20 = vsyncadd [#allocation3], %s19
      %s21 = sshll.u32 [#allocation2], 4
      %s22 = int_to_ptr.vmem [resolvable:$true] %s21
      %27 = dma.hbm_to_vmem [thread:$0]  %s0, 1024, %s22, [#allocation3], 128, 128, 8
    $region5: #{tpu_custom_call.1} parent=1 // pred_fallthru
      _
    // Predicated region
    $region6: #{tpu_custom_call.1} parent=1 // pred_check
      _
    $region7: #{tpu_custom_call.1} parent=1 // pred_check_branch
      %29 = sbr.rel (0) target = $region9
    $region8: #{tpu_custom_call.1} parent=1 // pred_region
      %s31 = ssub.s32 2048, 2048
      %32 = vsyncadd [#allocation6], %s31
      %s33 = sshll.u32 [#allocation5], 4
      %s34 = int_to_ptr.vmem [resolvable:$true] %s33
      %39 = dma.hbm_to_vmem [thread:$0]  %s1, 2048, %s34, [#allocation6], 128, 128, 8
    $region9: #{tpu_custom_call.1} parent=1 // pred_fallthru
      _
    // Predicated region
    $region10: #{tpu_custom_call.1} parent=1 // pred_check
      _
    $region11: #{tpu_custom_call.1} parent=1 // pred_check_branch
      %41 = sbr.rel (0) target = $region13
    $region12: #{tpu_custom_call.1} parent=1 // pred_region
      _
    $region13: #{tpu_custom_call.1} parent=1 // pred_fallthru
      _
    // Predicated region
    $region14: #{tpu_custom_call.1} parent=1 // pred_check
      _
    $region15: #{tpu_custom_call.1} parent=1 // pred_check_branch
      %43 = sbr.rel (0) target = $region17
    $region16: #{tpu_custom_call.1} parent=1 // pred_region
      %s45 = ssub.s32 2048, 2048
      %46 = vsyncadd [#allocation6], %s45
      %s47 = sshll.u32 [#allocation7], 4
      %s48 = int_to_ptr.vmem [resolvable:$true] %s47
      %53 = dma.hbm_to_vmem [thread:$0]  %s3, 2048, %s48, [#allocation6], 128, 128, 8
    $region17: #{tpu_custom_call.1} parent=1 // pred_fallthru
      _
    // Predicated region
    $region18: #{tpu_custom_call.1} parent=1 // pred_check
      _
    $region19: #{tpu_custom_call.1} parent=1 // pred_check_branch
      %55 = sbr.rel (0) target = $region21
    $region20: #{tpu_custom_call.1} parent=1 // pred_region
      _
    $region21: #{tpu_custom_call.1} parent=1 // pred_fallthru
      _
    // Predicated region
    $region22: #{tpu_custom_call.1} parent=1 // pred_check
      _
    $region23: #{tpu_custom_call.1} parent=1 // pred_check_branch
      %57 = sbr.rel (0) target = $region25
    $region24: #{tpu_custom_call.1} parent=1 // pred_region
      %s59 = ssub.s32 2048, 2048
      %60 = vsyncadd [#allocation9], %s59
      %s61 = sshll.u32 [#allocation8], 4
      %s62 = int_to_ptr.vmem [resolvable:$true] %s61
      %67 = dma.hbm_to_vmem [thread:$0]  %s5, 2048, %s62, [#allocation9], 128, 128, 8
    $region25: #{tpu_custom_call.1} parent=1 // pred_fallthru
      _
    // Predicated region
    $region26: #{tpu_custom_call.1} parent=1 // pred_check
      _
    $region27: #{tpu_custom_call.1} parent=1 // pred_check_branch
      %69 = sbr.rel (0) target = $region29
    $region28: #{tpu_custom_call.1} parent=1 // pred_region
      _
    $region29: #{tpu_custom_call.1} parent=1 // pred_fallthru
      _
    // Predicated region
    $region30: #{tpu_custom_call.1} parent=1 // pred_check
      _
    $region31: #{tpu_custom_call.1} parent=1 // pred_check_branch
      %71 = sbr.rel (0) target = $region33
    $region32: #{tpu_custom_call.1} parent=1 // pred_region
      %72 = dma.done [#allocation3], 1024
    $region33: #{tpu_custom_call.1} parent=1 // pred_fallthru
      _
    // Predicated region
    $region34: #{tpu_custom_call.1} parent=1 // pred_check
      _
    $region35: #{tpu_custom_call.1} parent=1 // pred_check_branch
      %74 = sbr.rel (0) target = $region37
    $region36: #{tpu_custom_call.1} parent=1 // pred_region
      %75 = dma.done [#allocation6], 2048
    $region37: #{tpu_custom_call.1} parent=1 // pred_fallthru
      _
    // Predicated region
    $region38: #{tpu_custom_call.1} parent=1 // pred_check
      _
    $region39: #{tpu_custom_call.1} parent=1 // pred_check_branch
      %77 = sbr.rel (0) target = $region41
    $region40: #{tpu_custom_call.1} parent=1 // pred_region
      %78 = dma.done [#allocation6], 2048
    $region41: #{tpu_custom_call.1} parent=1 // pred_fallthru
      _
    // Predicated region
    $region42: #{tpu_custom_call.1} parent=1 // pred_check
      _
    $region43: #{tpu_custom_call.1} parent=1 // pred_check_branch
      %80 = sbr.rel (0) target = $region45
    $region44: #{tpu_custom_call.1} parent=1 // pred_region
      %81 = dma.done [#allocation9], 2048
    $region45: #{tpu_custom_call.1} parent=1 // pred_fallthru
      _
    %v82 = vld [vmem:[#allocation2] sm:$0xff]
    %v83 = vld [vmem:[#allocation2 + $0x8] sm:$0xff]
    %v84 = vld [vmem:[#allocation2 + $0x10] sm:$0xff]
    %v85 = vld [vmem:[#allocation2 + $0x18] sm:$0xff]
    %v86 = vld [vmem:[#allocation2 + $0x20] sm:$0xff]
    %v87 = vld [vmem:[#allocation2 + $0x28] sm:$0xff]
    %v88 = vld [vmem:[#allocation2 + $0x30] sm:$0xff]
    %v89 = vld [vmem:[#allocation2 + $0x38] sm:$0xff]
    %v90 = vld [vmem:[#allocation5] sm:$0xff]
    %v91 = vld [vmem:[#allocation5 + $0x8] sm:$0xff]
    %v92 = vld [vmem:[#allocation5 + $0x10] sm:$0xff]
    %v93 = vld [vmem:[#allocation5 + $0x18] sm:$0xff]
    %v94 = vld [vmem:[#allocation5 + $0x20] sm:$0xff]
    %v95 = vld [vmem:[#allocation5 + $0x28] sm:$0xff]
    %v96 = vld [vmem:[#allocation5 + $0x30] sm:$0xff]
    %v97 = vld [vmem:[#allocation5 + $0x38] sm:$0xff]
    %v98 = vld [vmem:[#allocation5 + $0x40] sm:$0xff]
    %v99 = vld [vmem:[#allocation5 + $0x48] sm:$0xff]
    %v100 = vld [vmem:[#allocation5 + $0x50] sm:$0xff]
    %v101 = vld [vmem:[#allocation5 + $0x58] sm:$0xff]
    %v102 = vld [vmem:[#allocation5 + $0x60] sm:$0xff]
    %v103 = vld [vmem:[#allocation5 + $0x68] sm:$0xff]
    %v104 = vld [vmem:[#allocation5 + $0x70] sm:$0xff]
    %v105 = vld [vmem:[#allocation5 + $0x78] sm:$0xff]
    %v106 = vld [vmem:[%s2] sm:$0x1]
    %v108 = vlaneseq
    %v109 = vshrl.u32 %v108, 7
    %v110 = vsub.s32 0, %v109
    %v111 = vrot.slane %v106, %v110
    %113 = vmatprep.subr.mxu0 0.0
    %114 = vmatpush1.msra.mxu0 %v90
    %115 = vmatprep.subr.mxu0 0.0
    %116 = vmatpush1.msra.mxu0 %v91
    %117 = vmatprep.subr.mxu0 0.0
    %118 = vmatpush1.msra.mxu0 %v92
    %119 = vmatprep.subr.mxu0 0.0
    %120 = vmatpush1.msra.mxu0 %v93
    %121 = vmatprep.subr.mxu0 0.0
    %122 = vmatpush1.msra.mxu0 %v94
    %123 = vmatprep.subr.mxu0 0.0
    %124 = vmatpush1.msra.mxu0 %v95
    %125 = vmatprep.subr.mxu0 0.0
    %126 = vmatpush1.msra.mxu0 %v96
    %127 = vmatprep.subr.mxu0 0.0
    %128 = vmatpush1.msra.mxu0 %v97
    %129 = vmatprep.subr.mxu0 0.0
    %130 = vmatpush1.msra.mxu0 %v98
    %131 = vmatprep.subr.mxu0 0.0
    %132 = vmatpush1.msra.mxu0 %v99
    %133 = vmatprep.subr.mxu0 0.0
    %134 = vmatpush1.msra.mxu0 %v100
    %135 = vmatprep.subr.mxu0 0.0
    %136 = vmatpush1.msra.mxu0 %v101
    %137 = vmatprep.subr.mxu0 0.0
    %138 = vmatpush1.msra.mxu0 %v102
    %139 = vmatprep.subr.mxu0 0.0
    %140 = vmatpush1.msra.mxu0 %v103
    %141 = vmatprep.subr.mxu0 0.0
    %142 = vmatpush1.msra.mxu0 %v104
    %143 = vmatprep.subr.mxu0 0.0
    %144 = vmatpush1.msra.mxu0 %v105
    %145 = vmatprep.subr.mxu0 0.0
    %146 = vmatpush1.msra.mxu0 0.0
    %147 = vmatprep.subr.mxu0 0.0
    %148 = vmatpush1.msra.mxu0 0.0
    %149 = vmatprep.subr.mxu0 0.0
    %150 = vmatpush1.msra.mxu0 0.0
    %151 = vmatprep.subr.mxu0 0.0
    %152 = vmatpush1.msra.mxu0 0.0
    %153 = vmatprep.subr.mxu0 0.0
    %154 = vmatpush1.msra.mxu0 0.0
    %155 = vmatprep.subr.mxu0 0.0
    %156 = vmatpush1.msra.mxu0 0.0
    %157 = vmatprep.subr.mxu0 0.0
    %158 = vmatpush1.msra.mxu0 0.0
    %159 = vmatprep.subr.mxu0 0.0
    %160 = vmatpush1.msra.mxu0 0.0
    %161 = vmatprep.subr.mxu0 0.0
    %162 = vmatpush1.msra.mxu0 0.0
    %163 = vmatprep.subr.mxu0 0.0
    %164 = vmatpush1.msra.mxu0 0.0
    %165 = vmatprep.subr.mxu0 0.0
    %166 = vmatpush1.msra.mxu0 0.0
    %167 = vmatprep.subr.mxu0 0.0
    %168 = vmatpush1.msra.mxu0 0.0
    %169 = vmatprep.subr.mxu0 0.0
    %170 = vmatpush1.msra.mxu0 0.0
    %171 = vmatprep.subr.mxu0 0.0
    %172 = vmatpush1.msra.mxu0 0.0
    %173 = vmatprep.subr.mxu0 0.0
    %174 = vmatpush1.msra.mxu0 0.0
    %175 = vmatprep.subr.mxu0 0.0
    %176 = vmatpush1.msra.mxu0 0.0
    %177 = vmatprep.mubr.f32.mxu0 0.0
    %178 = vmatmul.mubr.f32.gmra.mrb[0].mxu0 %v82
    %v179 = vpop.f32.mrb[0].mxu0
    %v180 = vadd.f32 %v111, %v179
    %v181 = vpop.f32.mrb[0].mxu0
    %182 = vmatprep.mubr.f32.mxu0 0.0
    %183 = vmatmul.mubr.f32.gmra.mrb[0].mxu0 %v83
    %v184 = vpop.f32.mrb[0].mxu0
    %v185 = vadd.f32 %v111, %v184
    %v186 = vpop.f32.mrb[0].mxu0
    %187 = vmatprep.mubr.f32.mxu0 0.0
    %188 = vmatmul.mubr.f32.gmra.mrb[0].mxu0 %v84
    %v189 = vpop.f32.mrb[0].mxu0
    %v190 = vadd.f32 %v111, %v189
    %v191 = vpop.f32.mrb[0].mxu0
    %192 = vmatprep.mubr.f32.mxu0 0.0
    %193 = vmatmul.mubr.f32.gmra.mrb[0].mxu0 %v85
    %v194 = vpop.f32.mrb[0].mxu0
    %v195 = vadd.f32 %v111, %v194
    %v196 = vpop.f32.mrb[0].mxu0
    %197 = vmatprep.mubr.f32.mxu0 0.0
    %198 = vmatmul.mubr.f32.gmra.mrb[0].mxu0 %v86
    %v199 = vpop.f32.mrb[0].mxu0
    %v200 = vadd.f32 %v111, %v199
    %v201 = vpop.f32.mrb[0].mxu0
    %202 = vmatprep.mubr.f32.mxu0 0.0
    %203 = vmatmul.mubr.f32.gmra.mrb[0].mxu0 %v87
    %v204 = vpop.f32.mrb[0].mxu0
    %v205 = vadd.f32 %v111, %v204
    %v206 = vpop.f32.mrb[0].mxu0
    %207 = vmatprep.mubr.f32.mxu0 0.0
    %208 = vmatmul.mubr.f32.gmra.mrb[0].mxu0 %v88
    %v209 = vpop.f32.mrb[0].mxu0
    %v210 = vadd.f32 %v111, %v209
    %v211 = vpop.f32.mrb[0].mxu0
    %212 = vmatprep.mubr.f32.mxu0 0.0
    %213 = vmatmul.mubr.f32.gmra.mrb[0].mxu0 %v89
    %v214 = vpop.f32.mrb[0].mxu0
    %v215 = vadd.f32 %v111, %v214
    %v216 = vpop.f32.mrb[0].mxu0
    %217 = vdwg.mxu0
    %v218 = vtanh.pop %v180
    %v219 = vtanh.pop %v185
    %v220 = vtanh.pop %v190
    %v221 = vtanh.pop %v195
    %v222 = vtanh.pop %v200
    %v223 = vtanh.pop %v205
    %v224 = vtanh.pop %v210
    %v225 = vtanh.pop %v215
    %v226 = vld [vmem:[#allocation7] sm:$0xff]
    %v227 = vld [vmem:[#allocation7 + $0x8] sm:$0xff]
    %v228 = vld [vmem:[#allocation7 + $0x10] sm:$0xff]
    %v229 = vld [vmem:[#allocation7 + $0x18] sm:$0xff]
    %v230 = vld [vmem:[#allocation7 + $0x20] sm:$0xff]
    %v231 = vld [vmem:[#allocation7 + $0x28] sm:$0xff]
    %v232 = vld [vmem:[#allocation7 + $0x30] sm:$0xff]
    %v233 = vld [vmem:[#allocation7 + $0x38] sm:$0xff]
    %v234 = vld [vmem:[#allocation7 + $0x40] sm:$0xff]
    %v235 = vld [vmem:[#allocation7 + $0x48] sm:$0xff]
    %v236 = vld [vmem:[#allocation7 + $0x50] sm:$0xff]
    %v237 = vld [vmem:[#allocation7 + $0x58] sm:$0xff]
    %v238 = vld [vmem:[#allocation7 + $0x60] sm:$0xff]
    %v239 = vld [vmem:[#allocation7 + $0x68] sm:$0xff]
    %v240 = vld [vmem:[#allocation7 + $0x70] sm:$0xff]
    %v241 = vld [vmem:[#allocation7 + $0x78] sm:$0xff]
    %v242 = vld [vmem:[%s4] sm:$0x1]
    %v244 = vlaneseq
    %v245 = vshrl.u32 %v244, 7
    %v246 = vsub.s32 0, %v245
    %v247 = vrot.slane %v242, %v246
    %249 = vmatprep.subr.mxu0 0.0
    %250 = vmatpush1.msra.mxu0 %v226
    %251 = vmatprep.subr.mxu0 0.0
    %252 = vmatpush1.msra.mxu0 %v227
    %253 = vmatprep.subr.mxu0 0.0
    %254 = vmatpush1.msra.mxu0 %v228
    %255 = vmatprep.subr.mxu0 0.0
    %256 = vmatpush1.msra.mxu0 %v229
    %257 = vmatprep.subr.mxu0 0.0
    %258 = vmatpush1.msra.mxu0 %v230
    %259 = vmatprep.subr.mxu0 0.0
    %260 = vmatpush1.msra.mxu0 %v231
    %261 = vmatprep.subr.mxu0 0.0
    %262 = vmatpush1.msra.mxu0 %v232
    %263 = vmatprep.subr.mxu0 0.0
    %264 = vmatpush1.msra.mxu0 %v233
    %265 = vmatprep.subr.mxu0 0.0
    %266 = vmatpush1.msra.mxu0 %v234
    %267 = vmatprep.subr.mxu0 0.0
    %268 = vmatpush1.msra.mxu0 %v235
    %269 = vmatprep.subr.mxu0 0.0
    %270 = vmatpush1.msra.mxu0 %v236
    %271 = vmatprep.subr.mxu0 0.0
    %272 = vmatpush1.msra.mxu0 %v237
    %273 = vmatprep.subr.mxu0 0.0
    %274 = vmatpush1.msra.mxu0 %v238
    %275 = vmatprep.subr.mxu0 0.0
    %276 = vmatpush1.msra.mxu0 %v239
    %277 = vmatprep.subr.mxu0 0.0
    %278 = vmatpush1.msra.mxu0 %v240
    %279 = vmatprep.subr.mxu0 0.0
    %280 = vmatpush1.msra.mxu0 %v241
    %281 = vmatprep.subr.mxu0 0.0
    %282 = vmatpush1.msra.mxu0 0.0
    %283 = vmatprep.subr.mxu0 0.0
    %284 = vmatpush1.msra.mxu0 0.0
    %285 = vmatprep.subr.mxu0 0.0
    %286 = vmatpush1.msra.mxu0 0.0
    %287 = vmatprep.subr.mxu0 0.0
    %288 = vmatpush1.msra.mxu0 0.0
    %289 = vmatprep.subr.mxu0 0.0
    %290 = vmatpush1.msra.mxu0 0.0
    %291 = vmatprep.subr.mxu0 0.0
    %292 = vmatpush1.msra.mxu0 0.0
    %293 = vmatprep.subr.mxu0 0.0
    %294 = vmatpush1.msra.mxu0 0.0
    %295 = vmatprep.subr.mxu0 0.0
    %296 = vmatpush1.msra.mxu0 0.0
    %297 = vmatprep.subr.mxu0 0.0
    %298 = vmatpush1.msra.mxu0 0.0
    %299 = vmatprep.subr.mxu0 0.0
    %300 = vmatpush1.msra.mxu0 0.0
    %301 = vmatprep.subr.mxu0 0.0
    %302 = vmatpush1.msra.mxu0 0.0
    %303 = vmatprep.subr.mxu0 0.0
    %304 = vmatpush1.msra.mxu0 0.0
    %305 = vmatprep.subr.mxu0 0.0
    %306 = vmatpush1.msra.mxu0 0.0
    %307 = vmatprep.subr.mxu0 0.0
    %308 = vmatpush1.msra.mxu0 0.0
    %309 = vmatprep.subr.mxu0 0.0
    %310 = vmatpush1.msra.mxu0 0.0
    %311 = vmatprep.subr.mxu0 0.0
    %312 = vmatpush1.msra.mxu0 0.0
    %313 = vmatprep.mubr.f32.mxu0 0.0
    %314 = vmatmul.mubr.f32.gmra.mrb[0].mxu0 %v218
    %v315 = vpop.f32.mrb[0].mxu0
    %v316 = vadd.f32 %v247, %v315
    %v317 = vpop.f32.mrb[0].mxu0
    %318 = vmatprep.mubr.f32.mxu0 0.0
    %319 = vmatmul.mubr.f32.gmra.mrb[0].mxu0 %v219
    %v320 = vpop.f32.mrb[0].mxu0
    %v321 = vadd.f32 %v247, %v320
    %v322 = vpop.f32.mrb[0].mxu0
    %323 = vmatprep.mubr.f32.mxu0 0.0
    %324 = vmatmul.mubr.f32.gmra.mrb[0].mxu0 %v220
    %v325 = vpop.f32.mrb[0].mxu0
    %v326 = vadd.f32 %v247, %v325
    %v327 = vpop.f32.mrb[0].mxu0
    %328 = vmatprep.mubr.f32.mxu0 0.0
    %329 = vmatmul.mubr.f32.gmra.mrb[0].mxu0 %v221
    %v330 = vpop.f32.mrb[0].mxu0
    %v331 = vadd.f32 %v247, %v330
    %v332 = vpop.f32.mrb[0].mxu0
    %333 = vmatprep.mubr.f32.mxu0 0.0
    %334 = vmatmul.mubr.f32.gmra.mrb[0].mxu0 %v222
    %v335 = vpop.f32.mrb[0].mxu0
    %v336 = vadd.f32 %v247, %v335
    %v337 = vpop.f32.mrb[0].mxu0
    %338 = vmatprep.mubr.f32.mxu0 0.0
    %339 = vmatmul.mubr.f32.gmra.mrb[0].mxu0 %v223
    %v340 = vpop.f32.mrb[0].mxu0
    %v341 = vadd.f32 %v247, %v340
    %v342 = vpop.f32.mrb[0].mxu0
    %343 = vmatprep.mubr.f32.mxu0 0.0
    %344 = vmatmul.mubr.f32.gmra.mrb[0].mxu0 %v224
    %v345 = vpop.f32.mrb[0].mxu0
    %v346 = vadd.f32 %v247, %v345
    %v347 = vpop.f32.mrb[0].mxu0
    %348 = vmatprep.mubr.f32.mxu0 0.0
    %349 = vmatmul.mubr.f32.gmra.mrb[0].mxu0 %v225
    %v350 = vpop.f32.mrb[0].mxu0
    %v351 = vadd.f32 %v247, %v350
    %v352 = vpop.f32.mrb[0].mxu0
    %353 = vdwg.mxu0
    %v354 = vtanh.pop %v316
    %v355 = vtanh.pop %v321
    %v356 = vtanh.pop %v326
    %v357 = vtanh.pop %v331
    %v358 = vtanh.pop %v336
    %v359 = vtanh.pop %v341
    %v360 = vtanh.pop %v346
    %v361 = vtanh.pop %v351
    %v362 = vld [vmem:[#allocation8] sm:$0xff]
    %v363 = vld [vmem:[#allocation8 + $0x8] sm:$0xff]
    %v364 = vld [vmem:[#allocation8 + $0x10] sm:$0xff]
    %v365 = vld [vmem:[#allocation8 + $0x18] sm:$0xff]
    %v366 = vld [vmem:[#allocation8 + $0x20] sm:$0xff]
    %v367 = vld [vmem:[#allocation8 + $0x28] sm:$0xff]
    %v368 = vld [vmem:[#allocation8 + $0x30] sm:$0xff]
    %v369 = vld [vmem:[#allocation8 + $0x38] sm:$0xff]
    %v370 = vld [vmem:[#allocation8 + $0x40] sm:$0xff]
    %v371 = vld [vmem:[#allocation8 + $0x48] sm:$0xff]
    %v372 = vld [vmem:[#allocation8 + $0x50] sm:$0xff]
    %v373 = vld [vmem:[#allocation8 + $0x58] sm:$0xff]
    %v374 = vld [vmem:[#allocation8 + $0x60] sm:$0xff]
    %v375 = vld [vmem:[#allocation8 + $0x68] sm:$0xff]
    %v376 = vld [vmem:[#allocation8 + $0x70] sm:$0xff]
    %v377 = vld [vmem:[#allocation8 + $0x78] sm:$0xff]
    %v378 = vld [vmem:[%s6] sm:$0x1]
    %v380 = vlaneseq
    %v381 = vshrl.u32 %v380, 7
    %v382 = vsub.s32 0, %v381
    %v383 = vrot.slane %v378, %v382
    %385 = vmatprep.subr.mxu0 0.0
    %386 = vmatpush1.msra.mxu0 %v362
    %387 = vmatprep.subr.mxu0 0.0
    %388 = vmatpush1.msra.mxu0 %v363
    %389 = vmatprep.subr.mxu0 0.0
    %390 = vmatpush1.msra.mxu0 %v364
    %391 = vmatprep.subr.mxu0 0.0
    %392 = vmatpush1.msra.mxu0 %v365
    %393 = vmatprep.subr.mxu0 0.0
    %394 = vmatpush1.msra.mxu0 %v366
    %395 = vmatprep.subr.mxu0 0.0
    %396 = vmatpush1.msra.mxu0 %v367
    %397 = vmatprep.subr.mxu0 0.0
    %398 = vmatpush1.msra.mxu0 %v368
    %399 = vmatprep.subr.mxu0 0.0
    %400 = vmatpush1.msra.mxu0 %v369
    %401 = vmatprep.subr.mxu0 0.0
    %402 = vmatpush1.msra.mxu0 %v370
    %403 = vmatprep.subr.mxu0 0.0
    %404 = vmatpush1.msra.mxu0 %v371
    %405 = vmatprep.subr.mxu0 0.0
    %406 = vmatpush1.msra.mxu0 %v372
    %407 = vmatprep.subr.mxu0 0.0
    %408 = vmatpush1.msra.mxu0 %v373
    %409 = vmatprep.subr.mxu0 0.0
    %410 = vmatpush1.msra.mxu0 %v374
    %411 = vmatprep.subr.mxu0 0.0
    %412 = vmatpush1.msra.mxu0 %v375
    %413 = vmatprep.subr.mxu0 0.0
    %414 = vmatpush1.msra.mxu0 %v376
    %415 = vmatprep.subr.mxu0 0.0
    %416 = vmatpush1.msra.mxu0 %v377
    %417 = vmatprep.subr.mxu0 0.0
    %418 = vmatpush1.msra.mxu0 0.0
    %419 = vmatprep.subr.mxu0 0.0
    %420 = vmatpush1.msra.mxu0 0.0
    %421 = vmatprep.subr.mxu0 0.0
    %422 = vmatpush1.msra.mxu0 0.0
    %423 = vmatprep.subr.mxu0 0.0
    %424 = vmatpush1.msra.mxu0 0.0
    %425 = vmatprep.subr.mxu0 0.0
    %426 = vmatpush1.msra.mxu0 0.0
    %427 = vmatprep.subr.mxu0 0.0
    %428 = vmatpush1.msra.mxu0 0.0
    %429 = vmatprep.subr.mxu0 0.0
    %430 = vmatpush1.msra.mxu0 0.0
    %431 = vmatprep.subr.mxu0 0.0
    %432 = vmatpush1.msra.mxu0 0.0
    %433 = vmatprep.subr.mxu0 0.0
    %434 = vmatpush1.msra.mxu0 0.0
    %435 = vmatprep.subr.mxu0 0.0
    %436 = vmatpush1.msra.mxu0 0.0
    %437 = vmatprep.subr.mxu0 0.0
    %438 = vmatpush1.msra.mxu0 0.0
    %439 = vmatprep.subr.mxu0 0.0
    %440 = vmatpush1.msra.mxu0 0.0
    %441 = vmatprep.subr.mxu0 0.0
    %442 = vmatpush1.msra.mxu0 0.0
    %443 = vmatprep.subr.mxu0 0.0
    %444 = vmatpush1.msra.mxu0 0.0
    %445 = vmatprep.subr.mxu0 0.0
    %446 = vmatpush1.msra.mxu0 0.0
    %447 = vmatprep.subr.mxu0 0.0
    %448 = vmatpush1.msra.mxu0 0.0
    %449 = vmatprep.mubr.f32.mxu0 0.0
    %450 = vmatmul.mubr.f32.gmra.mrb[0].mxu0 %v354
    %v451 = vpop.f32.mrb[0].mxu0
    %v452 = vadd.f32 %v383, %v451
    %v453 = vpop.f32.mrb[0].mxu0
    %454 = vmatprep.mubr.f32.mxu0 0.0
    %455 = vmatmul.mubr.f32.gmra.mrb[0].mxu0 %v355
    %v456 = vpop.f32.mrb[0].mxu0
    %v457 = vadd.f32 %v383, %v456
    %v458 = vpop.f32.mrb[0].mxu0
    %459 = vmatprep.mubr.f32.mxu0 0.0
    %460 = vmatmul.mubr.f32.gmra.mrb[0].mxu0 %v356
    %v461 = vpop.f32.mrb[0].mxu0
    %v462 = vadd.f32 %v383, %v461
    %v463 = vpop.f32.mrb[0].mxu0
    %464 = vmatprep.mubr.f32.mxu0 0.0
    %465 = vmatmul.mubr.f32.gmra.mrb[0].mxu0 %v357
    %v466 = vpop.f32.mrb[0].mxu0
    %v467 = vadd.f32 %v383, %v466
    %v468 = vpop.f32.mrb[0].mxu0
    %469 = vmatprep.mubr.f32.mxu0 0.0
    %470 = vmatmul.mubr.f32.gmra.mrb[0].mxu0 %v358
    %v471 = vpop.f32.mrb[0].mxu0
    %v472 = vadd.f32 %v383, %v471
    %v473 = vpop.f32.mrb[0].mxu0
    %474 = vmatprep.mubr.f32.mxu0 0.0
    %475 = vmatmul.mubr.f32.gmra.mrb[0].mxu0 %v359
    %v476 = vpop.f32.mrb[0].mxu0
    %v477 = vadd.f32 %v383, %v476
    %v478 = vpop.f32.mrb[0].mxu0
    %479 = vmatprep.mubr.f32.mxu0 0.0
    %480 = vmatmul.mubr.f32.gmra.mrb[0].mxu0 %v360
    %v481 = vpop.f32.mrb[0].mxu0
    %v482 = vadd.f32 %v383, %v481
    %v483 = vpop.f32.mrb[0].mxu0
    %484 = vmatprep.mubr.f32.mxu0 0.0
    %485 = vmatmul.mubr.f32.gmra.mrb[0].mxu0 %v361
    %v486 = vpop.f32.mrb[0].mxu0
    %v487 = vadd.f32 %v383, %v486
    %v488 = vpop.f32.mrb[0].mxu0
    %489 = vdwg.mxu0
    %490 = vst [vmem:[#allocation10] sm:$0xff] %v452
    %491 = vst [vmem:[#allocation10 + $0x8] sm:$0xff] %v457
    %492 = vst [vmem:[#allocation10 + $0x10] sm:$0xff] %v462
    %493 = vst [vmem:[#allocation10 + $0x18] sm:$0xff] %v467
    %494 = vst [vmem:[#allocation10 + $0x20] sm:$0xff] %v472
    %495 = vst [vmem:[#allocation10 + $0x28] sm:$0xff] %v477
    %496 = vst [vmem:[#allocation10 + $0x30] sm:$0xff] %v482
    %497 = vst [vmem:[#allocation10 + $0x38] sm:$0xff] %v487
    // Predicated region
    $region46: #{tpu_custom_call.1} parent=1 // pred_check
      _
    $region47: #{tpu_custom_call.1} parent=1 // pred_check_branch
      %499 = sbr.rel (0) target = $region49
    $region48: #{tpu_custom_call.1} parent=1 // pred_region
      %s501 = ssub.s32 1024, 1024
      %502 = vsyncadd [#allocation4], %s501
      %s503 = sshll.u32 [#allocation10], 4
      %s504 = int_to_ptr.vmem [resolvable:$true] %s503
      %509 = dma.vmem_to_hbm [thread:$0]  %s504, 1024, %s7, [#allocation4], 128, 128, 8
    $region49: #{tpu_custom_call.1} parent=1 // pred_fallthru
      _
    // Predicated region
    $region50: #{tpu_custom_call.1} parent=1 // pred_check
      _
    $region51: #{tpu_custom_call.1} parent=1 // pred_check_branch
      %511 = sbr.rel (0) target = $region53
    $region52: #{tpu_custom_call.1} parent=1 // pred_region
      %512 = dma.done [#allocation4], 1024
    $region53: #{tpu_custom_call.1} parent=1 // pred_fallthru
      _
    %513 = vsyncpa [#allocation3], 1
    %514 = vsyncpa [#allocation6], 1
    %515 = vsyncpa [#allocation9], 1
    %516 = vsyncpa [#allocation4], 1

</llo_original>
